<compile_context>
chip_gen: v7x
topology: tpu7x:2x2x1
jax: 0.10.0
libtpu: 0.0.40
codegen_flags: <defaults>
</compile_context>

<pallas_src>
import functools

import jax
import jax.numpy as jnp
from jax.experimental import pallas as pl
from jax.experimental.pallas import tpu as pltpu


_VMEM = pl.BlockSpec(memory_space=pltpu.MemorySpace.VMEM)


# ---------------------------------------------------------------------------
# Kernel
# ---------------------------------------------------------------------------

def _attention_kernel(zf_ref, w1_ref, b1_ref, w2_ref, out_ref, beta_ref, *,
                      num_views):
    """Fused attention over `num_views` stacked representations.

    zf_ref  : (L*N, C)  views stacked view-major along the sublane axis
    w1_ref  : (C, H);  b1_ref: (1, H);  w2_ref: (1, H)
    out_ref : (N, C)   = sum_l beta[:, l] * z_l
    beta_ref: (N, L)   softmax over views
    """
    n = out_ref.shape[0]
    zf = zf_ref[...]                                            # (L*N, C)

    # One batched MXU matmul for all views.
    hidden = jnp.tanh(
        jnp.dot(zf, w1_ref[...], preferred_element_type=jnp.float32)
        + b1_ref[...])                                          # (L*N, H)

    # hidden @ w2 (width 1): VPU multiply + lane reduction instead of the MXU.
    score = jnp.sum(hidden * w2_ref[...], axis=-1, keepdims=True)   # (L*N, 1)

    # Per-view scores -> (N, L), softmax over the view axis (dim=1 in PyTorch).
    s = jnp.concatenate(
        [score[l * n:(l + 1) * n] for l in range(num_views)], axis=1)   # (N, L)
    m = jnp.max(s, axis=1, keepdims=True)
    e = jnp.exp(s - m)
    beta = e / jnp.sum(e, axis=1, keepdims=True)                # (N, L)

    # Weighted sum of views (L is small and static -> unrolled).
    acc = beta[:, 0:1] * zf[0:n]
    for l in range(1, num_views):
        acc = acc + beta[:, l:l + 1] * zf[l * n:(l + 1) * n]

    out_ref[...] = acc
    beta_ref[...] = beta


# ---------------------------------------------------------------------------
# Wrapper (single block: the whole problem fits VMEM at these sizes)
# ---------------------------------------------------------------------------

@jax.jit
def attention_forward(z, w1, b1, w2):
    """z: (N, L, C) -> (out (N, C), beta (N, L, 1)) matching the PyTorch module."""
    n, l, c = z.shape
    h = w1.shape[1]
    # View-major stacking so each view is a contiguous (N, C) slab (C on lanes);
    # done in the XLA wrapper so the kernel sees a plain 2-D lane-dense array.
    zf = jnp.transpose(z, (1, 0, 2)).reshape(l * n, c)
    out, beta = pl.pallas_call(
        functools.partial(_attention_kernel, num_views=l),
        out_shape=(jax.ShapeDtypeStruct((n, c), jnp.float32),
                   jax.ShapeDtypeStruct((n, l), jnp.float32)),
        in_specs=[_VMEM] * 4,
        out_specs=(_VMEM, _VMEM),
    )(zf, w1, b1.reshape(1, h), w2.reshape(1, h))
    return out, beta[:, :, None]                     # beta -> (N, L, 1) as in PyTorch


# ---------------------------------------------------------------------------
# Parameter init (PyTorch nn.Linear default: U(-1/sqrt(fan_in), 1/sqrt(fan_in)))
# ---------------------------------------------------------------------------

def init_attention_params(key, in_channels, hidden_size=64):
    k1, k2, k3 = jax.random.split(key, 3)
    s1 = in_channels ** -0.5
    s2 = hidden_size ** -0.5
    w1 = jax.random.uniform(k1, (in_channels, hidden_size), jnp.float32, -s1, s1)
    b1 = jax.random.uniform(k2, (hidden_size,), jnp.float32, -s1, s1)
    w2 = jax.random.uniform(k3, (hidden_size,), jnp.float32, -s2, s2)
    return w1, b1, w2


def attention_reference(z, w1, b1, w2):
    """Pure-JAX reference of the PyTorch forward."""
    s = jnp.tanh(jnp.einsum("nlc,ch->nlh", z, w1) + b1) @ w2[:, None]   # (N, L, 1)
    beta = jax.nn.softmax(s, axis=1)
    return jnp.sum(beta * z, axis=1), beta


# ---------------------------------------------------------------------------

if __name__ == "__main__":
    N = 128        # nodes / tokens
    L = 4          # number of stacked views (softmax axis)
    C = 128        # in_channels (lane-dense output)
    H = 64         # attention hidden_size (module default)

    root = jax.random.PRNGKey(0)
    kz, kp = jax.random.split(root)

    z = jax.random.normal(kz, (N, L, C), jnp.float32)
    w1, b1, w2 = init_attention_params(kp, C, H)

    out, beta = attention_forward(z, w1, b1, w2)
    jax.block_until_ready((out, beta))

    # shape & sanity checks
    assert out.shape == (N, C), out.shape
    assert beta.shape == (N, L, 1), beta.shape
    assert bool(jnp.all(jnp.isfinite(out)))
    assert bool(jnp.allclose(jnp.sum(beta, axis=1), 1.0, atol=1e-5))

    # numerical check vs. pure-JAX reference (generous tol: MXU accumulation order)
    out_ref, beta_ref = attention_reference(z, w1, b1, w2)
    assert bool(jnp.allclose(out, out_ref, atol=2e-2, rtol=2e-2))
    assert bool(jnp.allclose(beta, beta_ref, atol=1e-2, rtol=1e-2))

    print("KERNEL_OK")
</pallas_src>

<mosaic_0001>
module attributes {stable_mosaic.version = 11 : i64} {
  func.func @_attention_kernel(%arg0: memref<512x128xf32, #tpu.memory_space<vmem>>, %arg1: memref<128x64xf32, #tpu.memory_space<vmem>>, %arg2: memref<1x64xf32, #tpu.memory_space<vmem>>, %arg3: memref<1x64xf32, #tpu.memory_space<vmem>>, %arg4: memref<128x128xf32, #tpu.memory_space<vmem>>, %arg5: memref<128x4xf32, #tpu.memory_space<vmem>>) attributes {dimension_semantics = [], scalar_prefetch = 0 : i64, scratch_operands = 0 : i64, tpu.core_type = #tpu.core_type<tc>} {
    %c0 = arith.constant 0 : index
    %c0_0 = arith.constant 0 : index
    %0 = vector.load %arg0[%c0, %c0_0] : memref<512x128xf32, #tpu.memory_space<vmem>>, vector<512x128xf32>
    %c0_1 = arith.constant 0 : index
    %c0_2 = arith.constant 0 : index
    %1 = vector.load %arg1[%c0_1, %c0_2] : memref<128x64xf32, #tpu.memory_space<vmem>>, vector<128x64xf32>
    %cst = arith.constant dense<0.000000e+00> : vector<512x64xf32>
    %2 = tpu.matmul %0, %1, %cst {dimension_numbers = #tpu.dot_dimension_numbers<[1], [0], [0], [1], [0, 0, 1, 1], [], []>} : vector<512x128xf32>, vector<128x64xf32>, vector<512x64xf32> -> vector<512x64xf32>
    %c0_3 = arith.constant 0 : index
    %c0_4 = arith.constant 0 : index
    %3 = vector.load %arg2[%c0_3, %c0_4] : memref<1x64xf32, #tpu.memory_space<vmem>>, vector<1x64xf32>
    %4 = vector.broadcast %3 : vector<1x64xf32> to vector<512x64xf32>
    %5 = arith.addf %2, %4 : vector<512x64xf32>
    %6 = math.tanh %5 : vector<512x64xf32>
    %c0_5 = arith.constant 0 : index
    %c0_6 = arith.constant 0 : index
    %7 = vector.load %arg3[%c0_5, %c0_6] : memref<1x64xf32, #tpu.memory_space<vmem>>, vector<1x64xf32>
    %8 = vector.broadcast %7 : vector<1x64xf32> to vector<512x64xf32>
    %9 = arith.mulf %6, %8 : vector<512x64xf32>
    %cst_7 = arith.constant dense<0.000000e+00> : vector<512xf32>
    %10 = vector.multi_reduction <add>, %9, %cst_7 [1] : vector<512x64xf32> to vector<512xf32>
    %11 = vector.shape_cast %10 : vector<512xf32> to vector<512x1xf32>
    %12 = vector.extract_strided_slice %11 {offsets = [0, 0], sizes = [128, 1], strides = [1, 1]} : vector<512x1xf32> to vector<128x1xf32>
    %13 = vector.extract_strided_slice %11 {offsets = [128, 0], sizes = [128, 1], strides = [1, 1]} : vector<512x1xf32> to vector<128x1xf32>
    %14 = vector.extract_strided_slice %11 {offsets = [256, 0], sizes = [128, 1], strides = [1, 1]} : vector<512x1xf32> to vector<128x1xf32>
    %15 = vector.extract_strided_slice %11 {offsets = [384, 0], sizes = [128, 1], strides = [1, 1]} : vector<512x1xf32> to vector<128x1xf32>
    %16 = tpu.concatenate %12, %13, %14, %15 in 1 : vector<128x1xf32>, vector<128x1xf32>, vector<128x1xf32>, vector<128x1xf32> -> vector<128x4xf32>
    %cst_8 = arith.constant dense<0xFF800000> : vector<128xf32>
    %17 = vector.multi_reduction <maximumf>, %16, %cst_8 [1] : vector<128x4xf32> to vector<128xf32>
    %18 = vector.shape_cast %17 : vector<128xf32> to vector<128x1xf32>
    %19 = vector.broadcast %18 : vector<128x1xf32> to vector<128x4xf32>
    %20 = arith.subf %16, %19 : vector<128x4xf32>
    %21 = math.exp %20 : vector<128x4xf32>
    %cst_9 = arith.constant dense<0.000000e+00> : vector<128xf32>
    %22 = vector.multi_reduction <add>, %21, %cst_9 [1] : vector<128x4xf32> to vector<128xf32>
    %23 = vector.shape_cast %22 : vector<128xf32> to vector<128x1xf32>
    %24 = vector.broadcast %23 : vector<128x1xf32> to vector<128x4xf32>
    %25 = arith.divf %21, %24 : vector<128x4xf32>
    %26 = vector.extract_strided_slice %25 {offsets = [0, 0], sizes = [128, 1], strides = [1, 1]} : vector<128x4xf32> to vector<128x1xf32>
    %27 = vector.extract_strided_slice %0 {offsets = [0, 0], sizes = [128, 128], strides = [1, 1]} : vector<512x128xf32> to vector<128x128xf32>
    %28 = vector.broadcast %26 : vector<128x1xf32> to vector<128x128xf32>
    %29 = arith.mulf %28, %27 : vector<128x128xf32>
    %30 = vector.extract_strided_slice %25 {offsets = [0, 1], sizes = [128, 1], strides = [1, 1]} : vector<128x4xf32> to vector<128x1xf32>
    %31 = vector.extract_strided_slice %0 {offsets = [128, 0], sizes = [128, 128], strides = [1, 1]} : vector<512x128xf32> to vector<128x128xf32>
    %32 = vector.broadcast %30 : vector<128x1xf32> to vector<128x128xf32>
    %33 = arith.mulf %32, %31 : vector<128x128xf32>
    %34 = arith.addf %29, %33 : vector<128x128xf32>
    %35 = vector.extract_strided_slice %25 {offsets = [0, 2], sizes = [128, 1], strides = [1, 1]} : vector<128x4xf32> to vector<128x1xf32>
    %36 = vector.extract_strided_slice %0 {offsets = [256, 0], sizes = [128, 128], strides = [1, 1]} : vector<512x128xf32> to vector<128x128xf32>
    %37 = vector.broadcast %35 : vector<128x1xf32> to vector<128x128xf32>
    %38 = arith.mulf %37, %36 : vector<128x128xf32>
    %39 = arith.addf %34, %38 : vector<128x128xf32>
    %40 = vector.extract_strided_slice %25 {offsets = [0, 3], sizes = [128, 1], strides = [1, 1]} : vector<128x4xf32> to vector<128x1xf32>
    %41 = vector.extract_strided_slice %0 {offsets = [384, 0], sizes = [128, 128], strides = [1, 1]} : vector<512x128xf32> to vector<128x128xf32>
    %42 = vector.broadcast %40 : vector<128x1xf32> to vector<128x128xf32>
    %43 = arith.mulf %42, %41 : vector<128x128xf32>
    %44 = arith.addf %39, %43 : vector<128x128xf32>
    %c0_10 = arith.constant 0 : index
    %c0_11 = arith.constant 0 : index
    %45 = vector.load %arg4[%c0_10, %c0_11] : memref<128x128xf32, #tpu.memory_space<vmem>>, vector<128x128xf32>
    tpu.vector_store %arg4[%c0_10, %c0_11], %44 {strides = array<i32>} : memref<128x128xf32, #tpu.memory_space<vmem>>, vector<128x128xf32>,
    %c0_12 = arith.constant 0 : index
    %c0_13 = arith.constant 0 : index
    %46 = vector.load %arg5[%c0_12, %c0_13] : memref<128x4xf32, #tpu.memory_space<vmem>>, vector<128x4xf32>
    tpu.vector_store %arg5[%c0_12, %c0_13], %25 {strides = array<i32>} : memref<128x4xf32, #tpu.memory_space<vmem>>, vector<128x4xf32>,
    return
  }
}

</mosaic_0001>

<llo_original>
// kernel: attention_forward.1
$region0: #{attention_forward.1}
  #allocation0 [shape = 'u32[]', space=smem, size = 0x4, offset = 0x4, fixed_abs, tag = 'smem constant byte address 0x4 - core index']
  #allocation1 [shape = 'u32[144,128]{1,0:T(1,128)}', space=vmem, size = 0x12000, scoped, tag = 'internal scratch']
  %s0 = inlined_call_operand.vmem [shape: f32[512,128], index: 0, kind: input, shape index: {}]
  %s1 = inlined_call_operand.vmem [shape: f32[128,64], index: 1, kind: input, shape index: {}]
  %s2 = inlined_call_operand.vmem [shape: f32[1,64], index: 2, kind: input, shape index: {}]
  %s3 = inlined_call_operand.vmem [shape: f32[1,64], index: 3, kind: input, shape index: {}]
  %s4 = inlined_call_operand.hbm [shape: f32[128,128], index: 4, kind: output, shape index: {0}]
  %s5 = inlined_call_operand.vmem [shape: f32[128,4], index: 5, kind: output, shape index: {1}]
  %6 = xla_tuple %s4, %s5
  %s7 = sld [smem:[#allocation0]]
  $region34: #{attention_forward.1} parent=0
    _
  %s9 = ssub.s32 1, %s7
  %s10 = scalar_select 0, %s9, %s7
  $region1: #{attention_forward.1} parent=0
    #allocation2 [shape = 'u8[65536]{0}', space=vmem, size = 0x10000, scoped, tag = 'output window, operand 0, single buffered']
    #allocation3 [shape = 's32[1]{0}', space=sflag, size = 0x4, scoped, tag = 'scoped memory for attention_forward.1']
    %11 = vsyncpa [#allocation3], 0
    // Predicated region
    $region2: #{attention_forward.1} parent=1 // pred_check
      _
    $region3: #{attention_forward.1} parent=1 // pred_check_branch
      %13 = sbr.rel (0) target = $region5
    $region4: #{attention_forward.1} parent=1 // pred_region
      _
    $region5: #{attention_forward.1} parent=1 // pred_fallthru
      _
    // Predicated region
    $region6: #{attention_forward.1} parent=1 // pred_check
      _
    $region7: #{attention_forward.1} parent=1 // pred_check_branch
      %15 = sbr.rel (0) target = $region9
    $region8: #{attention_forward.1} parent=1 // pred_region
      _
    $region9: #{attention_forward.1} parent=1 // pred_fallthru
      _
    // Predicated region
    $region10: #{attention_forward.1} parent=1 // pred_check
      _
    $region11: #{attention_forward.1} parent=1 // pred_check_branch
      %17 = sbr.rel (0) target = $region13
    $region12: #{attention_forward.1} parent=1 // pred_region
      _
    $region13: #{attention_forward.1} parent=1 // pred_fallthru
      _
    // Predicated region
    $region14: #{attention_forward.1} parent=1 // pred_check
      _
    $region15: #{attention_forward.1} parent=1 // pred_check_branch
      %19 = sbr.rel (0) target = $region17
    $region16: #{attention_forward.1} parent=1 // pred_region
      _
    $region17: #{attention_forward.1} parent=1 // pred_fallthru
      _
    %v20 = vld [vmem:[%s0] sm:$0xff]
    %v21 = vld [vmem:[%s0 + $0x8] sm:$0xff]
    %v22 = vld [vmem:[%s0 + $0x10] sm:$0xff]
    %v23 = vld [vmem:[%s0 + $0x18] sm:$0xff]
    %v24 = vld [vmem:[%s0 + $0x20] sm:$0xff]
    %v25 = vld [vmem:[%s0 + $0x28] sm:$0xff]
    %v26 = vld [vmem:[%s0 + $0x30] sm:$0xff]
    %v27 = vld [vmem:[%s0 + $0x38] sm:$0xff]
    %v28 = vld [vmem:[%s0 + $0x40] sm:$0xff]
    %v29 = vld [vmem:[%s0 + $0x48] sm:$0xff]
    %v30 = vld [vmem:[%s0 + $0x50] sm:$0xff]
    %v31 = vld [vmem:[%s0 + $0x58] sm:$0xff]
    %v32 = vld [vmem:[%s0 + $0x60] sm:$0xff]
    %v33 = vld [vmem:[%s0 + $0x68] sm:$0xff]
    %v34 = vld [vmem:[%s0 + $0x70] sm:$0xff]
    %v35 = vld [vmem:[%s0 + $0x78] sm:$0xff]
    %v36 = vld [vmem:[%s0 + $0x80] sm:$0xff]
    %v37 = vld [vmem:[%s0 + $0x88] sm:$0xff]
    %v38 = vld [vmem:[%s0 + $0x90] sm:$0xff]
    %v39 = vld [vmem:[%s0 + $0x98] sm:$0xff]
    %v40 = vld [vmem:[%s0 + $0xa0] sm:$0xff]
    %v41 = vld [vmem:[%s0 + $0xa8] sm:$0xff]
    %v42 = vld [vmem:[%s0 + $0xb0] sm:$0xff]
    %v43 = vld [vmem:[%s0 + $0xb8] sm:$0xff]
    %v44 = vld [vmem:[%s0 + $0xc0] sm:$0xff]
    %v45 = vld [vmem:[%s0 + $0xc8] sm:$0xff]
    %v46 = vld [vmem:[%s0 + $0xd0] sm:$0xff]
    %v47 = vld [vmem:[%s0 + $0xd8] sm:$0xff]
    %v48 = vld [vmem:[%s0 + $0xe0] sm:$0xff]
    %v49 = vld [vmem:[%s0 + $0xe8] sm:$0xff]
    %v50 = vld [vmem:[%s0 + $0xf0] sm:$0xff]
    %v51 = vld [vmem:[%s0 + $0xf8] sm:$0xff]
    %v52 = vld [vmem:[%s0 + $0x100] sm:$0xff]
    %v53 = vld [vmem:[%s0 + $0x108] sm:$0xff]
    %v54 = vld [vmem:[%s0 + $0x110] sm:$0xff]
    %v55 = vld [vmem:[%s0 + $0x118] sm:$0xff]
    %v56 = vld [vmem:[%s0 + $0x120] sm:$0xff]
    %v57 = vld [vmem:[%s0 + $0x128] sm:$0xff]
    %v58 = vld [vmem:[%s0 + $0x130] sm:$0xff]
    %v59 = vld [vmem:[%s0 + $0x138] sm:$0xff]
    %v60 = vld [vmem:[%s0 + $0x140] sm:$0xff]
    %v61 = vld [vmem:[%s0 + $0x148] sm:$0xff]
    %v62 = vld [vmem:[%s0 + $0x150] sm:$0xff]
    %v63 = vld [vmem:[%s0 + $0x158] sm:$0xff]
    %v64 = vld [vmem:[%s0 + $0x160] sm:$0xff]
    %v65 = vld [vmem:[%s0 + $0x168] sm:$0xff]
    %v66 = vld [vmem:[%s0 + $0x170] sm:$0xff]
    %v67 = vld [vmem:[%s0 + $0x178] sm:$0xff]
    %v68 = vld [vmem:[%s0 + $0x180] sm:$0xff]
    %v69 = vld [vmem:[%s0 + $0x188] sm:$0xff]
    %v70 = vld [vmem:[%s0 + $0x190] sm:$0xff]
    %v71 = vld [vmem:[%s0 + $0x198] sm:$0xff]
    %v72 = vld [vmem:[%s0 + $0x1a0] sm:$0xff]
    %v73 = vld [vmem:[%s0 + $0x1a8] sm:$0xff]
    %v74 = vld [vmem:[%s0 + $0x1b0] sm:$0xff]
    %v75 = vld [vmem:[%s0 + $0x1b8] sm:$0xff]
    %v76 = vld [vmem:[%s0 + $0x1c0] sm:$0xff]
    %v77 = vld [vmem:[%s0 + $0x1c8] sm:$0xff]
    %v78 = vld [vmem:[%s0 + $0x1d0] sm:$0xff]
    %v79 = vld [vmem:[%s0 + $0x1d8] sm:$0xff]
    %v80 = vld [vmem:[%s0 + $0x1e0] sm:$0xff]
    %v81 = vld [vmem:[%s0 + $0x1e8] sm:$0xff]
    %v82 = vld [vmem:[%s0 + $0x1f0] sm:$0xff]
    %v83 = vld [vmem:[%s0 + $0x1f8] sm:$0xff]
    %v84 = vld [vmem:[%s1] sm:$0xff]
    %v85 = vld [vmem:[%s1 + $0x8] sm:$0xff]
    %v86 = vld [vmem:[%s1 + $0x10] sm:$0xff]
    %v87 = vld [vmem:[%s1 + $0x18] sm:$0xff]
    %v88 = vld [vmem:[%s1 + $0x20] sm:$0xff]
    %v89 = vld [vmem:[%s1 + $0x28] sm:$0xff]
    %v90 = vld [vmem:[%s1 + $0x30] sm:$0xff]
    %v91 = vld [vmem:[%s1 + $0x38] sm:$0xff]
    %v92 = vld [vmem:[%s1 + $0x40] sm:$0xff]
    %v93 = vld [vmem:[%s1 + $0x48] sm:$0xff]
    %v94 = vld [vmem:[%s1 + $0x50] sm:$0xff]
    %v95 = vld [vmem:[%s1 + $0x58] sm:$0xff]
    %v96 = vld [vmem:[%s1 + $0x60] sm:$0xff]
    %v97 = vld [vmem:[%s1 + $0x68] sm:$0xff]
    %v98 = vld [vmem:[%s1 + $0x70] sm:$0xff]
    %v99 = vld [vmem:[%s1 + $0x78] sm:$0xff]
    %v100 = vld [vmem:[%s2] sm:$0x1]
    %v102 = vlaneseq
    %v103 = vshrl.u32 %v102, 7
    %v104 = vsub.s32 0, %v103
    %v105 = vrot.slane %v100, %v104
    %107 = vmatprep.subr.mxu0 0.0
    %108 = vmatpush1.msra.mxu0 %v84
    %109 = vmatprep.subr.mxu0 0.0
    %110 = vmatpush1.msra.mxu0 %v85
    %111 = vmatprep.subr.mxu0 0.0
    %112 = vmatpush1.msra.mxu0 %v86
    %113 = vmatprep.subr.mxu0 0.0
    %114 = vmatpush1.msra.mxu0 %v87
    %115 = vmatprep.subr.mxu0 0.0
    %116 = vmatpush1.msra.mxu0 %v88
    %117 = vmatprep.subr.mxu0 0.0
    %118 = vmatpush1.msra.mxu0 %v89
    %119 = vmatprep.subr.mxu0 0.0
    %120 = vmatpush1.msra.mxu0 %v90
    %121 = vmatprep.subr.mxu0 0.0
    %122 = vmatpush1.msra.mxu0 %v91
    %123 = vmatprep.subr.mxu0 0.0
    %124 = vmatpush1.msra.mxu0 %v92
    %125 = vmatprep.subr.mxu0 0.0
    %126 = vmatpush1.msra.mxu0 %v93
    %127 = vmatprep.subr.mxu0 0.0
    %128 = vmatpush1.msra.mxu0 %v94
    %129 = vmatprep.subr.mxu0 0.0
    %130 = vmatpush1.msra.mxu0 %v95
    %131 = vmatprep.subr.mxu0 0.0
    %132 = vmatpush1.msra.mxu0 %v96
    %133 = vmatprep.subr.mxu0 0.0
    %134 = vmatpush1.msra.mxu0 %v97
    %135 = vmatprep.subr.mxu0 0.0
    %136 = vmatpush1.msra.mxu0 %v98
    %137 = vmatprep.subr.mxu0 0.0
    %138 = vmatpush1.msra.mxu0 %v99
    %139 = vmatprep.subr.mxu0 0.0
    %140 = vmatpush1.msra.mxu0 0.0
    %141 = vmatprep.subr.mxu0 0.0
    %142 = vmatpush1.msra.mxu0 0.0
    %143 = vmatprep.subr.mxu0 0.0
    %144 = vmatpush1.msra.mxu0 0.0
    %145 = vmatprep.subr.mxu0 0.0
    %146 = vmatpush1.msra.mxu0 0.0
    %147 = vmatprep.subr.mxu0 0.0
    %148 = vmatpush1.msra.mxu0 0.0
    %149 = vmatprep.subr.mxu0 0.0
    %150 = vmatpush1.msra.mxu0 0.0
    %151 = vmatprep.subr.mxu0 0.0
    %152 = vmatpush1.msra.mxu0 0.0
    %153 = vmatprep.subr.mxu0 0.0
    %154 = vmatpush1.msra.mxu0 0.0
    %155 = vmatprep.subr.mxu0 0.0
    %156 = vmatpush1.msra.mxu0 0.0
    %157 = vmatprep.subr.mxu0 0.0
    %158 = vmatpush1.msra.mxu0 0.0
    %159 = vmatprep.subr.mxu0 0.0
    %160 = vmatpush1.msra.mxu0 0.0
    %161 = vmatprep.subr.mxu0 0.0
    %162 = vmatpush1.msra.mxu0 0.0
    %163 = vmatprep.subr.mxu0 0.0
    %164 = vmatpush1.msra.mxu0 0.0
    %165 = vmatprep.subr.mxu0 0.0
    %166 = vmatpush1.msra.mxu0 0.0
    %167 = vmatprep.subr.mxu0 0.0
    %168 = vmatpush1.msra.mxu0 0.0
    %169 = vmatprep.subr.mxu0 0.0
    %170 = vmatpush1.msra.mxu0 0.0
    %171 = vmatprep.mubr.f32.mxu0 0.0
    %172 = vmatmul.mubr.f32.gmra.mrb[0].mxu0 %v20
    %v173 = vpop.f32.mrb[0].mxu0
    %v174 = vadd.f32 %v105, %v173
    %v175 = vpop.f32.mrb[0].mxu0
    %176 = vmatprep.mubr.f32.mxu0 0.0
    %177 = vmatmul.mubr.f32.gmra.mrb[0].mxu0 %v21
    %v178 = vpop.f32.mrb[0].mxu0
    %v179 = vadd.f32 %v105, %v178
    %v180 = vpop.f32.mrb[0].mxu0
    %181 = vmatprep.mubr.f32.mxu0 0.0
    %182 = vmatmul.mubr.f32.gmra.mrb[0].mxu0 %v22
    %v183 = vpop.f32.mrb[0].mxu0
    %v184 = vadd.f32 %v105, %v183
    %v185 = vpop.f32.mrb[0].mxu0
    %186 = vmatprep.mubr.f32.mxu0 0.0
    %187 = vmatmul.mubr.f32.gmra.mrb[0].mxu0 %v23
    %v188 = vpop.f32.mrb[0].mxu0
    %v189 = vadd.f32 %v105, %v188
    %v190 = vpop.f32.mrb[0].mxu0
    %191 = vmatprep.mubr.f32.mxu0 0.0
    %192 = vmatmul.mubr.f32.gmra.mrb[0].mxu0 %v24
    %v193 = vpop.f32.mrb[0].mxu0
    %v194 = vadd.f32 %v105, %v193
    %v195 = vpop.f32.mrb[0].mxu0
    %196 = vmatprep.mubr.f32.mxu0 0.0
    %197 = vmatmul.mubr.f32.gmra.mrb[0].mxu0 %v25
    %v198 = vpop.f32.mrb[0].mxu0
    %v199 = vadd.f32 %v105, %v198
    %v200 = vpop.f32.mrb[0].mxu0
    %201 = vmatprep.mubr.f32.mxu0 0.0
    %202 = vmatmul.mubr.f32.gmra.mrb[0].mxu0 %v26
    %v203 = vpop.f32.mrb[0].mxu0
    %v204 = vadd.f32 %v105, %v203
    %v205 = vpop.f32.mrb[0].mxu0
    %206 = vmatprep.mubr.f32.mxu0 0.0
    %207 = vmatmul.mubr.f32.gmra.mrb[0].mxu0 %v27
    %v208 = vpop.f32.mrb[0].mxu0
    %v209 = vadd.f32 %v105, %v208
    %v210 = vpop.f32.mrb[0].mxu0
    %211 = vmatprep.mubr.f32.mxu0 0.0
    %212 = vmatmul.mubr.f32.gmra.mrb[0].mxu0 %v28
    %v213 = vpop.f32.mrb[0].mxu0
    %v214 = vadd.f32 %v105, %v213
    %v215 = vpop.f32.mrb[0].mxu0
    %216 = vmatprep.mubr.f32.mxu0 0.0
    %217 = vmatmul.mubr.f32.gmra.mrb[0].mxu0 %v29
    %v218 = vpop.f32.mrb[0].mxu0
    %v219 = vadd.f32 %v105, %v218
    %v220 = vpop.f32.mrb[0].mxu0
    %221 = vmatprep.mubr.f32.mxu0 0.0
    %222 = vmatmul.mubr.f32.gmra.mrb[0].mxu0 %v30
    %v223 = vpop.f32.mrb[0].mxu0
    %v224 = vadd.f32 %v105, %v223
    %v225 = vpop.f32.mrb[0].mxu0
    %226 = vmatprep.mubr.f32.mxu0 0.0
    %227 = vmatmul.mubr.f32.gmra.mrb[0].mxu0 %v31
    %v228 = vpop.f32.mrb[0].mxu0
    %v229 = vadd.f32 %v105, %v228
    %v230 = vpop.f32.mrb[0].mxu0
    %231 = vmatprep.mubr.f32.mxu0 0.0
    %232 = vmatmul.mubr.f32.gmra.mrb[0].mxu0 %v32
    %v233 = vpop.f32.mrb[0].mxu0
    %v234 = vadd.f32 %v105, %v233
    %v235 = vpop.f32.mrb[0].mxu0
    %236 = vmatprep.mubr.f32.mxu0 0.0
    %237 = vmatmul.mubr.f32.gmra.mrb[0].mxu0 %v33
    %v238 = vpop.f32.mrb[0].mxu0
    %v239 = vadd.f32 %v105, %v238
    %v240 = vpop.f32.mrb[0].mxu0
    %241 = vmatprep.mubr.f32.mxu0 0.0
    %242 = vmatmul.mubr.f32.gmra.mrb[0].mxu0 %v34
    %v243 = vpop.f32.mrb[0].mxu0
    %v244 = vadd.f32 %v105, %v243
    %v245 = vpop.f32.mrb[0].mxu0
    %246 = vmatprep.mubr.f32.mxu0 0.0
    %247 = vmatmul.mubr.f32.gmra.mrb[0].mxu0 %v35
    %v248 = vpop.f32.mrb[0].mxu0
    %v249 = vadd.f32 %v105, %v248
    %v250 = vpop.f32.mrb[0].mxu0
    %251 = vmatprep.mubr.f32.mxu0 0.0
    %252 = vmatmul.mubr.f32.gmra.mrb[0].mxu0 %v36
    %v253 = vpop.f32.mrb[0].mxu0
    %v254 = vadd.f32 %v105, %v253
    %v255 = vpop.f32.mrb[0].mxu0
    %256 = vmatprep.mubr.f32.mxu0 0.0
    %257 = vmatmul.mubr.f32.gmra.mrb[0].mxu0 %v37
    %v258 = vpop.f32.mrb[0].mxu0
    %v259 = vadd.f32 %v105, %v258
    %v260 = vpop.f32.mrb[0].mxu0
    %261 = vmatprep.mubr.f32.mxu0 0.0
    %262 = vmatmul.mubr.f32.gmra.mrb[0].mxu0 %v38
    %v263 = vpop.f32.mrb[0].mxu0
    %v264 = vadd.f32 %v105, %v263
    %v265 = vpop.f32.mrb[0].mxu0
    %266 = vmatprep.mubr.f32.mxu0 0.0
    %267 = vmatmul.mubr.f32.gmra.mrb[0].mxu0 %v39
    %v268 = vpop.f32.mrb[0].mxu0
    %v269 = vadd.f32 %v105, %v268
    %v270 = vpop.f32.mrb[0].mxu0
    %271 = vmatprep.mubr.f32.mxu0 0.0
    %272 = vmatmul.mubr.f32.gmra.mrb[0].mxu0 %v40
    %v273 = vpop.f32.mrb[0].mxu0
    %v274 = vadd.f32 %v105, %v273
    %v275 = vpop.f32.mrb[0].mxu0
    %276 = vmatprep.mubr.f32.mxu0 0.0
    %277 = vmatmul.mubr.f32.gmra.mrb[0].mxu0 %v41
    %v278 = vpop.f32.mrb[0].mxu0
    %v279 = vadd.f32 %v105, %v278
    %v280 = vpop.f32.mrb[0].mxu0
    %281 = vmatprep.mubr.f32.mxu0 0.0
    %282 = vmatmul.mubr.f32.gmra.mrb[0].mxu0 %v42
    %v283 = vpop.f32.mrb[0].mxu0
    %v284 = vadd.f32 %v105, %v283
    %v285 = vpop.f32.mrb[0].mxu0
    %286 = vmatprep.mubr.f32.mxu0 0.0
    %287 = vmatmul.mubr.f32.gmra.mrb[0].mxu0 %v43
    %v288 = vpop.f32.mrb[0].mxu0
    %v289 = vadd.f32 %v105, %v288
    %v290 = vpop.f32.mrb[0].mxu0
    %291 = vmatprep.mubr.f32.mxu0 0.0
    %292 = vmatmul.mubr.f32.gmra.mrb[0].mxu0 %v44
    %v293 = vpop.f32.mrb[0].mxu0
    %v294 = vadd.f32 %v105, %v293
    %v295 = vpop.f32.mrb[0].mxu0
    %296 = vmatprep.mubr.f32.mxu0 0.0
    %297 = vmatmul.mubr.f32.gmra.mrb[0].mxu0 %v45
    %v298 = vpop.f32.mrb[0].mxu0
    %v299 = vadd.f32 %v105, %v298
    %v300 = vpop.f32.mrb[0].mxu0
    %301 = vmatprep.mubr.f32.mxu0 0.0
    %302 = vmatmul.mubr.f32.gmra.mrb[0].mxu0 %v46
    %v303 = vpop.f32.mrb[0].mxu0
    %v304 = vadd.f32 %v105, %v303
    %v305 = vpop.f32.mrb[0].mxu0
    %306 = vmatprep.mubr.f32.mxu0 0.0
    %307 = vmatmul.mubr.f32.gmra.mrb[0].mxu0 %v47
    %v308 = vpop.f32.mrb[0].mxu0
    %v309 = vadd.f32 %v105, %v308
    %v310 = vpop.f32.mrb[0].mxu0
    %311 = vmatprep.mubr.f32.mxu0 0.0
    %312 = vmatmul.mubr.f32.gmra.mrb[0].mxu0 %v48
    %v313 = vpop.f32.mrb[0].mxu0
    %v314 = vadd.f32 %v105, %v313
    %v315 = vpop.f32.mrb[0].mxu0
    %316 = vmatprep.mubr.f32.mxu0 0.0
    %317 = vmatmul.mubr.f32.gmra.mrb[0].mxu0 %v49
    %v318 = vpop.f32.mrb[0].mxu0
    %v319 = vadd.f32 %v105, %v318
    %v320 = vpop.f32.mrb[0].mxu0
    %321 = vmatprep.mubr.f32.mxu0 0.0
    %322 = vmatmul.mubr.f32.gmra.mrb[0].mxu0 %v50
    %v323 = vpop.f32.mrb[0].mxu0
    %v324 = vadd.f32 %v105, %v323
    %v325 = vpop.f32.mrb[0].mxu0
    %326 = vmatprep.mubr.f32.mxu0 0.0
    %327 = vmatmul.mubr.f32.gmra.mrb[0].mxu0 %v51
    %v328 = vpop.f32.mrb[0].mxu0
    %v329 = vadd.f32 %v105, %v328
    %v330 = vpop.f32.mrb[0].mxu0
    %331 = vmatprep.mubr.f32.mxu0 0.0
    %332 = vmatmul.mubr.f32.gmra.mrb[0].mxu0 %v52
    %v333 = vpop.f32.mrb[0].mxu0
    %v334 = vadd.f32 %v105, %v333
    %v335 = vpop.f32.mrb[0].mxu0
    %336 = vmatprep.mubr.f32.mxu0 0.0
    %337 = vmatmul.mubr.f32.gmra.mrb[0].mxu0 %v53
    %v338 = vpop.f32.mrb[0].mxu0
    %v339 = vadd.f32 %v105, %v338
    %v340 = vpop.f32.mrb[0].mxu0
    %341 = vmatprep.mubr.f32.mxu0 0.0
    %342 = vmatmul.mubr.f32.gmra.mrb[0].mxu0 %v54
    %v343 = vpop.f32.mrb[0].mxu0
    %v344 = vadd.f32 %v105, %v343
    %v345 = vpop.f32.mrb[0].mxu0
    %346 = vmatprep.mubr.f32.mxu0 0.0
    %347 = vmatmul.mubr.f32.gmra.mrb[0].mxu0 %v55
    %v348 = vpop.f32.mrb[0].mxu0
    %v349 = vadd.f32 %v105, %v348
    %v350 = vpop.f32.mrb[0].mxu0
    %351 = vmatprep.mubr.f32.mxu0 0.0
    %352 = vmatmul.mubr.f32.gmra.mrb[0].mxu0 %v56
    %v353 = vpop.f32.mrb[0].mxu0
    %v354 = vadd.f32 %v105, %v353
    %v355 = vpop.f32.mrb[0].mxu0
    %356 = vmatprep.mubr.f32.mxu0 0.0
    %357 = vmatmul.mubr.f32.gmra.mrb[0].mxu0 %v57
    %v358 = vpop.f32.mrb[0].mxu0
    %v359 = vadd.f32 %v105, %v358
    %v360 = vpop.f32.mrb[0].mxu0
    %361 = vmatprep.mubr.f32.mxu0 0.0
    %362 = vmatmul.mubr.f32.gmra.mrb[0].mxu0 %v58
    %v363 = vpop.f32.mrb[0].mxu0
    %v364 = vadd.f32 %v105, %v363
    %v365 = vpop.f32.mrb[0].mxu0
    %366 = vmatprep.mubr.f32.mxu0 0.0
    %367 = vmatmul.mubr.f32.gmra.mrb[0].mxu0 %v59
    %v368 = vpop.f32.mrb[0].mxu0
    %v369 = vadd.f32 %v105, %v368
    %v370 = vpop.f32.mrb[0].mxu0
    %371 = vmatprep.mubr.f32.mxu0 0.0
    %372 = vmatmul.mubr.f32.gmra.mrb[0].mxu0 %v60
    %v373 = vpop.f32.mrb[0].mxu0
    %v374 = vadd.f32 %v105, %v373
    %v375 = vpop.f32.mrb[0].mxu0
    %376 = vmatprep.mubr.f32.mxu0 0.0
    %377 = vmatmul.mubr.f32.gmra.mrb[0].mxu0 %v61
    %v378 = vpop.f32.mrb[0].mxu0
    %v379 = vadd.f32 %v105, %v378
    %v380 = vpop.f32.mrb[0].mxu0
    %381 = vmatprep.mubr.f32.mxu0 0.0
    %382 = vmatmul.mubr.f32.gmra.mrb[0].mxu0 %v62
    %v383 = vpop.f32.mrb[0].mxu0
    %v384 = vadd.f32 %v105, %v383
    %v385 = vpop.f32.mrb[0].mxu0
    %386 = vmatprep.mubr.f32.mxu0 0.0
    %387 = vmatmul.mubr.f32.gmra.mrb[0].mxu0 %v63
    %v388 = vpop.f32.mrb[0].mxu0
    %v389 = vadd.f32 %v105, %v388
    %v390 = vpop.f32.mrb[0].mxu0
    %391 = vmatprep.mubr.f32.mxu0 0.0
    %392 = vmatmul.mubr.f32.gmra.mrb[0].mxu0 %v64
    %v393 = vpop.f32.mrb[0].mxu0
    %v394 = vadd.f32 %v105, %v393
    %v395 = vpop.f32.mrb[0].mxu0
    %396 = vmatprep.mubr.f32.mxu0 0.0
    %397 = vmatmul.mubr.f32.gmra.mrb[0].mxu0 %v65
    %v398 = vpop.f32.mrb[0].mxu0
    %v399 = vadd.f32 %v105, %v398
    %v400 = vpop.f32.mrb[0].mxu0
    %401 = vmatprep.mubr.f32.mxu0 0.0
    %402 = vmatmul.mubr.f32.gmra.mrb[0].mxu0 %v66
    %v403 = vpop.f32.mrb[0].mxu0
    %v404 = vadd.f32 %v105, %v403
    %v405 = vpop.f32.mrb[0].mxu0
    %406 = vmatprep.mubr.f32.mxu0 0.0
    %407 = vmatmul.mubr.f32.gmra.mrb[0].mxu0 %v67
    %v408 = vpop.f32.mrb[0].mxu0
    %v409 = vadd.f32 %v105, %v408
    %v410 = vpop.f32.mrb[0].mxu0
    %411 = vmatprep.mubr.f32.mxu0 0.0
    %412 = vmatmul.mubr.f32.gmra.mrb[0].mxu0 %v68
    %v413 = vpop.f32.mrb[0].mxu0
    %v414 = vadd.f32 %v105, %v413
    %v415 = vpop.f32.mrb[0].mxu0
    %416 = vmatprep.mubr.f32.mxu0 0.0
    %417 = vmatmul.mubr.f32.gmra.mrb[0].mxu0 %v69
    %v418 = vpop.f32.mrb[0].mxu0
    %v419 = vadd.f32 %v105, %v418
    %v420 = vpop.f32.mrb[0].mxu0
    %421 = vmatprep.mubr.f32.mxu0 0.0
    %422 = vmatmul.mubr.f32.gmra.mrb[0].mxu0 %v70
    %v423 = vpop.f32.mrb[0].mxu0
    %v424 = vadd.f32 %v105, %v423
    %v425 = vpop.f32.mrb[0].mxu0
    %426 = vmatprep.mubr.f32.mxu0 0.0
    %427 = vmatmul.mubr.f32.gmra.mrb[0].mxu0 %v71
    %v428 = vpop.f32.mrb[0].mxu0
    %v429 = vadd.f32 %v105, %v428
    %v430 = vpop.f32.mrb[0].mxu0
    %431 = vmatprep.mubr.f32.mxu0 0.0
    %432 = vmatmul.mubr.f32.gmra.mrb[0].mxu0 %v72
    %v433 = vpop.f32.mrb[0].mxu0
    %v434 = vadd.f32 %v105, %v433
    %v435 = vpop.f32.mrb[0].mxu0
    %436 = vmatprep.mubr.f32.mxu0 0.0
    %437 = vmatmul.mubr.f32.gmra.mrb[0].mxu0 %v73
    %v438 = vpop.f32.mrb[0].mxu0
    %v439 = vadd.f32 %v105, %v438
    %v440 = vpop.f32.mrb[0].mxu0
    %441 = vmatprep.mubr.f32.mxu0 0.0
    %442 = vmatmul.mubr.f32.gmra.mrb[0].mxu0 %v74
    %v443 = vpop.f32.mrb[0].mxu0
    %v444 = vadd.f32 %v105, %v443
    %v445 = vpop.f32.mrb[0].mxu0
    %446 = vmatprep.mubr.f32.mxu0 0.0
    %447 = vmatmul.mubr.f32.gmra.mrb[0].mxu0 %v75
    %v448 = vpop.f32.mrb[0].mxu0
    %v449 = vadd.f32 %v105, %v448
    %v450 = vpop.f32.mrb[0].mxu0
    %451 = vmatprep.mubr.f32.mxu0 0.0
    %452 = vmatmul.mubr.f32.gmra.mrb[0].mxu0 %v76
    %v453 = vpop.f32.mrb[0].mxu0
    %v454 = vadd.f32 %v105, %v453
    %v455 = vpop.f32.mrb[0].mxu0
    %456 = vmatprep.mubr.f32.mxu0 0.0
    %457 = vmatmul.mubr.f32.gmra.mrb[0].mxu0 %v77
    %v458 = vpop.f32.mrb[0].mxu0
    %v459 = vadd.f32 %v105, %v458
    %v460 = vpop.f32.mrb[0].mxu0
    %461 = vmatprep.mubr.f32.mxu0 0.0
    %462 = vmatmul.mubr.f32.gmra.mrb[0].mxu0 %v78
    %v463 = vpop.f32.mrb[0].mxu0
    %v464 = vadd.f32 %v105, %v463
    %v465 = vpop.f32.mrb[0].mxu0
    %466 = vmatprep.mubr.f32.mxu0 0.0
    %467 = vmatmul.mubr.f32.gmra.mrb[0].mxu0 %v79
    %v468 = vpop.f32.mrb[0].mxu0
    %v469 = vadd.f32 %v105, %v468
    %v470 = vpop.f32.mrb[0].mxu0
    %471 = vmatprep.mubr.f32.mxu0 0.0
    %472 = vmatmul.mubr.f32.gmra.mrb[0].mxu0 %v80
    %v473 = vpop.f32.mrb[0].mxu0
    %v474 = vadd.f32 %v105, %v473
    %v475 = vpop.f32.mrb[0].mxu0
    %476 = vmatprep.mubr.f32.mxu0 0.0
    %477 = vmatmul.mubr.f32.gmra.mrb[0].mxu0 %v81
    %v478 = vpop.f32.mrb[0].mxu0
    %v479 = vadd.f32 %v105, %v478
    %v480 = vpop.f32.mrb[0].mxu0
    %481 = vmatprep.mubr.f32.mxu0 0.0
    %482 = vmatmul.mubr.f32.gmra.mrb[0].mxu0 %v82
    %v483 = vpop.f32.mrb[0].mxu0
    %v484 = vadd.f32 %v105, %v483
    %v485 = vpop.f32.mrb[0].mxu0
    %486 = vmatprep.mubr.f32.mxu0 0.0
    %487 = vmatmul.mubr.f32.gmra.mrb[0].mxu0 %v83
    %v488 = vpop.f32.mrb[0].mxu0
    %v489 = vadd.f32 %v105, %v488
    %v490 = vpop.f32.mrb[0].mxu0
    %491 = vdwg.mxu0
    %v492 = vtanh.pop %v174
    %v493 = vtanh.pop %v179
    %v494 = vtanh.pop %v184
    %v495 = vtanh.pop %v189
    %v496 = vtanh.pop %v194
    %v497 = vtanh.pop %v199
    %v498 = vtanh.pop %v204
    %v499 = vtanh.pop %v209
    %v500 = vtanh.pop %v214
    %v501 = vtanh.pop %v219
    %v502 = vtanh.pop %v224
    %v503 = vtanh.pop %v229
    %v504 = vtanh.pop %v234
    %v505 = vtanh.pop %v239
    %v506 = vtanh.pop %v244
    %v507 = vtanh.pop %v249
    %v508 = vtanh.pop %v254
    %v509 = vtanh.pop %v259
    %v510 = vtanh.pop %v264
    %v511 = vtanh.pop %v269
    %v512 = vtanh.pop %v274
    %v513 = vtanh.pop %v279
    %v514 = vtanh.pop %v284
    %v515 = vtanh.pop %v289
    %v516 = vtanh.pop %v294
    %v517 = vtanh.pop %v299
    %v518 = vtanh.pop %v304
    %v519 = vtanh.pop %v309
    %v520 = vtanh.pop %v314
    %v521 = vtanh.pop %v319
    %v522 = vtanh.pop %v324
    %v523 = vtanh.pop %v329
    %v524 = vtanh.pop %v334
    %v525 = vtanh.pop %v339
    %v526 = vtanh.pop %v344
    %v527 = vtanh.pop %v349
    %v528 = vtanh.pop %v354
    %v529 = vtanh.pop %v359
    %v530 = vtanh.pop %v364
    %v531 = vtanh.pop %v369
    %v532 = vtanh.pop %v374
    %v533 = vtanh.pop %v379
    %v534 = vtanh.pop %v384
    %v535 = vtanh.pop %v389
    %v536 = vtanh.pop %v394
    %v537 = vtanh.pop %v399
    %v538 = vtanh.pop %v404
    %v539 = vtanh.pop %v409
    %v540 = vtanh.pop %v414
    %v541 = vtanh.pop %v419
    %v542 = vtanh.pop %v424
    %v543 = vtanh.pop %v429
    %v544 = vtanh.pop %v434
    %v545 = vtanh.pop %v439
    %v546 = vtanh.pop %v444
    %v547 = vtanh.pop %v449
    %v548 = vtanh.pop %v454
    %v549 = vtanh.pop %v459
    %v550 = vtanh.pop %v464
    %v551 = vtanh.pop %v469
    %v552 = vtanh.pop %v474
    %v553 = vtanh.pop %v479
    %v554 = vtanh.pop %v484
    %v555 = vtanh.pop %v489
    %v556 = vld [vmem:[%s3] sm:$0x1]
    %v558 = vlaneseq
    %v559 = vshrl.u32 %v558, 7
    %v560 = vsub.s32 0, %v559
    %v561 = vrot.slane %v556, %v560
    %v563 = vmul.f32 %v492, %v561
    %v564 = vmul.f32 %v493, %v561
    %v565 = vmul.f32 %v494, %v561
    %v566 = vmul.f32 %v495, %v561
    %v567 = vmul.f32 %v496, %v561
    %v568 = vmul.f32 %v497, %v561
    %v569 = vmul.f32 %v498, %v561
    %v570 = vmul.f32 %v499, %v561
    %v571 = vmul.f32 %v500, %v561
    %v572 = vmul.f32 %v501, %v561
    %v573 = vmul.f32 %v502, %v561
    %v574 = vmul.f32 %v503, %v561
    %v575 = vmul.f32 %v504, %v561
    %v576 = vmul.f32 %v505, %v561
    %v577 = vmul.f32 %v506, %v561
    %v578 = vmul.f32 %v507, %v561
    %v579 = vmul.f32 %v508, %v561
    %v580 = vmul.f32 %v509, %v561
    %v581 = vmul.f32 %v510, %v561
    %v582 = vmul.f32 %v511, %v561
    %v583 = vmul.f32 %v512, %v561
    %v584 = vmul.f32 %v513, %v561
    %v585 = vmul.f32 %v514, %v561
    %v586 = vmul.f32 %v515, %v561
    %v587 = vmul.f32 %v516, %v561
    %v588 = vmul.f32 %v517, %v561
    %v589 = vmul.f32 %v518, %v561
    %v590 = vmul.f32 %v519, %v561
    %v591 = vmul.f32 %v520, %v561
    %v592 = vmul.f32 %v521, %v561
    %v593 = vmul.f32 %v522, %v561
    %v594 = vmul.f32 %v523, %v561
    %v595 = vmul.f32 %v524, %v561
    %v596 = vmul.f32 %v525, %v561
    %v597 = vmul.f32 %v526, %v561
    %v598 = vmul.f32 %v527, %v561
    %v599 = vmul.f32 %v528, %v561
    %v600 = vmul.f32 %v529, %v561
    %v601 = vmul.f32 %v530, %v561
    %v602 = vmul.f32 %v531, %v561
    %v603 = vmul.f32 %v532, %v561
    %v604 = vmul.f32 %v533, %v561
    %v605 = vmul.f32 %v534, %v561
    %v606 = vmul.f32 %v535, %v561
    %v607 = vmul.f32 %v536, %v561
    %v608 = vmul.f32 %v537, %v561
    %v609 = vmul.f32 %v538, %v561
    %v610 = vmul.f32 %v539, %v561
    %v611 = vmul.f32 %v540, %v561
    %v612 = vmul.f32 %v541, %v561
    %v613 = vmul.f32 %v542, %v561
    %v614 = vmul.f32 %v543, %v561
    %v615 = vmul.f32 %v544, %v561
    %v616 = vmul.f32 %v545, %v561
    %v617 = vmul.f32 %v546, %v561
    %v618 = vmul.f32 %v547, %v561
    %v619 = vmul.f32 %v548, %v561
    %v620 = vmul.f32 %v549, %v561
    %v621 = vmul.f32 %v550, %v561
    %v622 = vmul.f32 %v551, %v561
    %v623 = vmul.f32 %v552, %v561
    %v624 = vmul.f32 %v553, %v561
    %v625 = vmul.f32 %v554, %v561
    %v626 = vmul.f32 %v555, %v561
    %vm627 = vcmask 523264
    %v628 = vsel %vm627, %v563, 0.0
    %629 = vadd.xlane.f32.xlu0 %v628
    %v630 = vpop.xlane.xlu0 %629
    %v631 = vsel %vm627, %v564, 0.0
    %632 = vadd.xlane.f32.xlu0 %v631
    %v633 = vpop.xlane.xlu0 %632
    %v634 = vsel %vm627, %v565, 0.0
    %635 = vadd.xlane.f32.xlu0 %v634
    %v636 = vpop.xlane.xlu0 %635
    %v637 = vsel %vm627, %v566, 0.0
    %638 = vadd.xlane.f32.xlu0 %v637
    %v639 = vpop.xlane.xlu0 %638
    %v640 = vsel %vm627, %v567, 0.0
    %641 = vadd.xlane.f32.xlu0 %v640
    %v642 = vpop.xlane.xlu0 %641
    %v643 = vsel %vm627, %v568, 0.0
    %644 = vadd.xlane.f32.xlu0 %v643
    %v645 = vpop.xlane.xlu0 %644
    %v646 = vsel %vm627, %v569, 0.0
    %647 = vadd.xlane.f32.xlu0 %v646
    %v648 = vpop.xlane.xlu0 %647
    %v649 = vsel %vm627, %v570, 0.0
    %650 = vadd.xlane.f32.xlu0 %v649
    %v651 = vpop.xlane.xlu0 %650
    %v652 = vsel %vm627, %v571, 0.0
    %653 = vadd.xlane.f32.xlu0 %v652
    %v654 = vpop.xlane.xlu0 %653
    %v655 = vsel %vm627, %v572, 0.0
    %656 = vadd.xlane.f32.xlu0 %v655
    %v657 = vpop.xlane.xlu0 %656
    %v658 = vsel %vm627, %v573, 0.0
    %659 = vadd.xlane.f32.xlu0 %v658
    %v660 = vpop.xlane.xlu0 %659
    %v661 = vsel %vm627, %v574, 0.0
    %662 = vadd.xlane.f32.xlu0 %v661
    %v663 = vpop.xlane.xlu0 %662
    %v664 = vsel %vm627, %v575, 0.0
    %665 = vadd.xlane.f32.xlu0 %v664
    %v666 = vpop.xlane.xlu0 %665
    %v667 = vsel %vm627, %v576, 0.0
    %668 = vadd.xlane.f32.xlu0 %v667
    %v669 = vpop.xlane.xlu0 %668
    %v670 = vsel %vm627, %v577, 0.0
    %671 = vadd.xlane.f32.xlu0 %v670
    %v672 = vpop.xlane.xlu0 %671
    %v673 = vsel %vm627, %v578, 0.0
    %674 = vadd.xlane.f32.xlu0 %v673
    %v675 = vpop.xlane.xlu0 %674
    %v676 = vsel %vm627, %v579, 0.0
    %677 = vadd.xlane.f32.xlu0 %v676
    %v678 = vpop.xlane.xlu0 %677
    %v679 = vsel %vm627, %v580, 0.0
    %680 = vadd.xlane.f32.xlu0 %v679
    %v681 = vpop.xlane.xlu0 %680
    %v682 = vsel %vm627, %v581, 0.0
    %683 = vadd.xlane.f32.xlu0 %v682
    %v684 = vpop.xlane.xlu0 %683
    %v685 = vsel %vm627, %v582, 0.0
    %686 = vadd.xlane.f32.xlu0 %v685
    %v687 = vpop.xlane.xlu0 %686
    %v688 = vsel %vm627, %v583, 0.0
    %689 = vadd.xlane.f32.xlu0 %v688
    %v690 = vpop.xlane.xlu0 %689
    %v691 = vsel %vm627, %v584, 0.0
    %692 = vadd.xlane.f32.xlu0 %v691
    %v693 = vpop.xlane.xlu0 %692
    %v694 = vsel %vm627, %v585, 0.0
    %695 = vadd.xlane.f32.xlu0 %v694
    %v696 = vpop.xlane.xlu0 %695
    %v697 = vsel %vm627, %v586, 0.0
    %698 = vadd.xlane.f32.xlu0 %v697
    %v699 = vpop.xlane.xlu0 %698
    %v700 = vsel %vm627, %v587, 0.0
    %701 = vadd.xlane.f32.xlu0 %v700
    %v702 = vpop.xlane.xlu0 %701
    %v703 = vsel %vm627, %v588, 0.0
    %704 = vadd.xlane.f32.xlu0 %v703
    %v705 = vpop.xlane.xlu0 %704
    %v706 = vsel %vm627, %v589, 0.0
    %707 = vadd.xlane.f32.xlu0 %v706
    %v708 = vpop.xlane.xlu0 %707
    %v709 = vsel %vm627, %v590, 0.0
    %710 = vadd.xlane.f32.xlu0 %v709
    %v711 = vpop.xlane.xlu0 %710
    %v712 = vsel %vm627, %v591, 0.0
    %713 = vadd.xlane.f32.xlu0 %v712
    %v714 = vpop.xlane.xlu0 %713
    %v715 = vsel %vm627, %v592, 0.0
    %716 = vadd.xlane.f32.xlu0 %v715
    %v717 = vpop.xlane.xlu0 %716
    %v718 = vsel %vm627, %v593, 0.0
    %719 = vadd.xlane.f32.xlu0 %v718
    %v720 = vpop.xlane.xlu0 %719
    %v721 = vsel %vm627, %v594, 0.0
    %722 = vadd.xlane.f32.xlu0 %v721
    %v723 = vpop.xlane.xlu0 %722
    %v724 = vsel %vm627, %v595, 0.0
    %725 = vadd.xlane.f32.xlu0 %v724
    %v726 = vpop.xlane.xlu0 %725
    %v727 = vsel %vm627, %v596, 0.0
    %728 = vadd.xlane.f32.xlu0 %v727
    %v729 = vpop.xlane.xlu0 %728
    %v730 = vsel %vm627, %v597, 0.0
    %731 = vadd.xlane.f32.xlu0 %v730
    %v732 = vpop.xlane.xlu0 %731
    %v733 = vsel %vm627, %v598, 0.0
    %734 = vadd.xlane.f32.xlu0 %v733
    %v735 = vpop.xlane.xlu0 %734
    %v736 = vsel %vm627, %v599, 0.0
    %737 = vadd.xlane.f32.xlu0 %v736
    %v738 = vpop.xlane.xlu0 %737
    %v739 = vsel %vm627, %v600, 0.0
    %740 = vadd.xlane.f32.xlu0 %v739
    %v741 = vpop.xlane.xlu0 %740
    %v742 = vsel %vm627, %v601, 0.0
    %743 = vadd.xlane.f32.xlu0 %v742
    %v744 = vpop.xlane.xlu0 %743
    %v745 = vsel %vm627, %v602, 0.0
    %746 = vadd.xlane.f32.xlu0 %v745
    %v747 = vpop.xlane.xlu0 %746
    %v748 = vsel %vm627, %v603, 0.0
    %749 = vadd.xlane.f32.xlu0 %v748
    %v750 = vpop.xlane.xlu0 %749
    %v751 = vsel %vm627, %v604, 0.0
    %752 = vadd.xlane.f32.xlu0 %v751
    %v753 = vpop.xlane.xlu0 %752
    %v754 = vsel %vm627, %v605, 0.0
    %755 = vadd.xlane.f32.xlu0 %v754
    %v756 = vpop.xlane.xlu0 %755
    %v757 = vsel %vm627, %v606, 0.0
    %758 = vadd.xlane.f32.xlu0 %v757
    %v759 = vpop.xlane.xlu0 %758
    %v760 = vsel %vm627, %v607, 0.0
    %761 = vadd.xlane.f32.xlu0 %v760
    %v762 = vpop.xlane.xlu0 %761
    %v763 = vsel %vm627, %v608, 0.0
    %764 = vadd.xlane.f32.xlu0 %v763
    %v765 = vpop.xlane.xlu0 %764
    %v766 = vsel %vm627, %v609, 0.0
    %767 = vadd.xlane.f32.xlu0 %v766
    %v768 = vpop.xlane.xlu0 %767
    %v769 = vsel %vm627, %v610, 0.0
    %770 = vadd.xlane.f32.xlu0 %v769
    %v771 = vpop.xlane.xlu0 %770
    %v772 = vsel %vm627, %v611, 0.0
    %773 = vadd.xlane.f32.xlu0 %v772
    %v774 = vpop.xlane.xlu0 %773
    %v775 = vsel %vm627, %v612, 0.0
    %776 = vadd.xlane.f32.xlu0 %v775
    %v777 = vpop.xlane.xlu0 %776
    %v778 = vsel %vm627, %v613, 0.0
    %779 = vadd.xlane.f32.xlu0 %v778
    %v780 = vpop.xlane.xlu0 %779
    %v781 = vsel %vm627, %v614, 0.0
    %782 = vadd.xlane.f32.xlu0 %v781
    %v783 = vpop.xlane.xlu0 %782
    %v784 = vsel %vm627, %v615, 0.0
    %785 = vadd.xlane.f32.xlu0 %v784
    %v786 = vpop.xlane.xlu0 %785
    %v787 = vsel %vm627, %v616, 0.0
    %788 = vadd.xlane.f32.xlu0 %v787
    %v789 = vpop.xlane.xlu0 %788
    %v790 = vsel %vm627, %v617, 0.0
    %791 = vadd.xlane.f32.xlu0 %v790
    %v792 = vpop.xlane.xlu0 %791
    %v793 = vsel %vm627, %v618, 0.0
    %794 = vadd.xlane.f32.xlu0 %v793
    %v795 = vpop.xlane.xlu0 %794
    %v796 = vsel %vm627, %v619, 0.0
    %797 = vadd.xlane.f32.xlu0 %v796
    %v798 = vpop.xlane.xlu0 %797
    %v799 = vsel %vm627, %v620, 0.0
    %800 = vadd.xlane.f32.xlu0 %v799
    %v801 = vpop.xlane.xlu0 %800
    %v802 = vsel %vm627, %v621, 0.0
    %803 = vadd.xlane.f32.xlu0 %v802
    %v804 = vpop.xlane.xlu0 %803
    %v805 = vsel %vm627, %v622, 0.0
    %806 = vadd.xlane.f32.xlu0 %v805
    %v807 = vpop.xlane.xlu0 %806
    %v808 = vsel %vm627, %v623, 0.0
    %809 = vadd.xlane.f32.xlu0 %v808
    %v810 = vpop.xlane.xlu0 %809
    %v811 = vsel %vm627, %v624, 0.0
    %812 = vadd.xlane.f32.xlu0 %v811
    %v813 = vpop.xlane.xlu0 %812
    %v814 = vsel %vm627, %v625, 0.0
    %815 = vadd.xlane.f32.xlu0 %v814
    %v816 = vpop.xlane.xlu0 %815
    %v817 = vsel %vm627, %v626, 0.0
    %818 = vadd.xlane.f32.xlu0 %v817
    %v819 = vpop.xlane.xlu0 %818
    %vm820 = vcmask 7168
    %v821 = vsel %vm820, %v630, %v678
    %v822 = vsel %vm820, %v633, %v681
    %v823 = vsel %vm820, %v636, %v684
    %v824 = vsel %vm820, %v639, %v687
    %v825 = vsel %vm820, %v642, %v690
    %v826 = vsel %vm820, %v645, %v693
    %v827 = vsel %vm820, %v648, %v696
    %v828 = vsel %vm820, %v651, %v699
    %v829 = vsel %vm820, %v654, %v702
    %v830 = vsel %vm820, %v657, %v705
    %v831 = vsel %vm820, %v660, %v708
    %v832 = vsel %vm820, %v663, %v711
    %v833 = vsel %vm820, %v666, %v714
    %v834 = vsel %vm820, %v669, %v717
    %v835 = vsel %vm820, %v672, %v720
    %v836 = vsel %vm820, %v675, %v723
    %vm837 = vcmask 15360
    %v838 = vsel %vm837, %v821, %v726
    %v839 = vsel %vm837, %v822, %v729
    %v840 = vsel %vm837, %v823, %v732
    %v841 = vsel %vm837, %v824, %v735
    %v842 = vsel %vm837, %v825, %v738
    %v843 = vsel %vm837, %v826, %v741
    %v844 = vsel %vm837, %v827, %v744
    %v845 = vsel %vm837, %v828, %v747
    %v846 = vsel %vm837, %v829, %v750
    %v847 = vsel %vm837, %v830, %v753
    %v848 = vsel %vm837, %v831, %v756
    %v849 = vsel %vm837, %v832, %v759
    %v850 = vsel %vm837, %v833, %v762
    %v851 = vsel %vm837, %v834, %v765
    %v852 = vsel %vm837, %v835, %v768
    %v853 = vsel %vm837, %v836, %v771
    %vm854 = vcmask 23552
    %v855 = vsel %vm854, %v838, %v774
    %v856 = vsel %vm854, %v839, %v777
    %v857 = vsel %vm854, %v840, %v780
    %v858 = vsel %vm854, %v841, %v783
    %v859 = vsel %vm854, %v842, %v786
    %v860 = vsel %vm854, %v843, %v789
    %v861 = vsel %vm854, %v844, %v792
    %v862 = vsel %vm854, %v845, %v795
    %v863 = vsel %vm854, %v846, %v798
    %v864 = vsel %vm854, %v847, %v801
    %v865 = vsel %vm854, %v848, %v804
    %v866 = vsel %vm854, %v849, %v807
    %v867 = vsel %vm854, %v850, %v810
    %v868 = vsel %vm854, %v851, %v813
    %v869 = vsel %vm854, %v852, %v816
    %v870 = vsel %vm854, %v853, %v819
    %vm871 = vcmask 31744
    %v872 = vsel %vm871, %v855, -inf
    %873 = vmax.xlane.f32.xlu0 %v872
    %v874 = vpop.xlane.xlu0 %873
    %v875 = vsel %vm871, %v856, -inf
    %876 = vmax.xlane.f32.xlu0 %v875
    %v877 = vpop.xlane.xlu0 %876
    %v878 = vsel %vm871, %v857, -inf
    %879 = vmax.xlane.f32.xlu0 %v878
    %v880 = vpop.xlane.xlu0 %879
    %v881 = vsel %vm871, %v858, -inf
    %882 = vmax.xlane.f32.xlu0 %v881
    %v883 = vpop.xlane.xlu0 %882
    %v884 = vsel %vm871, %v859, -inf
    %885 = vmax.xlane.f32.xlu0 %v884
    %v886 = vpop.xlane.xlu0 %885
    %v887 = vsel %vm871, %v860, -inf
    %888 = vmax.xlane.f32.xlu0 %v887
    %v889 = vpop.xlane.xlu0 %888
    %v890 = vsel %vm871, %v861, -inf
    %891 = vmax.xlane.f32.xlu0 %v890
    %v892 = vpop.xlane.xlu0 %891
    %v893 = vsel %vm871, %v862, -inf
    %894 = vmax.xlane.f32.xlu0 %v893
    %v895 = vpop.xlane.xlu0 %894
    %v896 = vsel %vm871, %v863, -inf
    %897 = vmax.xlane.f32.xlu0 %v896
    %v898 = vpop.xlane.xlu0 %897
    %v899 = vsel %vm871, %v864, -inf
    %900 = vmax.xlane.f32.xlu0 %v899
    %v901 = vpop.xlane.xlu0 %900
    %v902 = vsel %vm871, %v865, -inf
    %903 = vmax.xlane.f32.xlu0 %v902
    %v904 = vpop.xlane.xlu0 %903
    %v905 = vsel %vm871, %v866, -inf
    %906 = vmax.xlane.f32.xlu0 %v905
    %v907 = vpop.xlane.xlu0 %906
    %v908 = vsel %vm871, %v867, -inf
    %909 = vmax.xlane.f32.xlu0 %v908
    %v910 = vpop.xlane.xlu0 %909
    %v911 = vsel %vm871, %v868, -inf
    %912 = vmax.xlane.f32.xlu0 %v911
    %v913 = vpop.xlane.xlu0 %912
    %v914 = vsel %vm871, %v869, -inf
    %915 = vmax.xlane.f32.xlu0 %v914
    %v916 = vpop.xlane.xlu0 %915
    %v917 = vsel %vm871, %v870, -inf
    %918 = vmax.xlane.f32.xlu0 %v917
    %v919 = vpop.xlane.xlu0 %918
    %v920 = vsub.f32 %v855, %v874
    %v921 = vsub.f32 %v856, %v877
    %v922 = vsub.f32 %v857, %v880
    %v923 = vsub.f32 %v858, %v883
    %v924 = vsub.f32 %v859, %v886
    %v925 = vsub.f32 %v860, %v889
    %v926 = vsub.f32 %v861, %v892
    %v927 = vsub.f32 %v862, %v895
    %v928 = vsub.f32 %v863, %v898
    %v929 = vsub.f32 %v864, %v901
    %v930 = vsub.f32 %v865, %v904
    %v931 = vsub.f32 %v866, %v907
    %v932 = vsub.f32 %v867, %v910
    %v933 = vsub.f32 %v868, %v913
    %v934 = vsub.f32 %v869, %v916
    %v935 = vsub.f32 %v870, %v919
    %v936 = vmul.f32 %v920, 1.442695
    %v937 = vpow.pop %v936
    %v938 = vmul.f32 %v921, 1.442695
    %v939 = vpow.pop %v938
    %v940 = vmul.f32 %v922, 1.442695
    %v941 = vpow.pop %v940
    %v942 = vmul.f32 %v923, 1.442695
    %v943 = vpow.pop %v942
    %v944 = vmul.f32 %v924, 1.442695
    %v945 = vpow.pop %v944
    %v946 = vmul.f32 %v925, 1.442695
    %v947 = vpow.pop %v946
    %v948 = vmul.f32 %v926, 1.442695
    %v949 = vpow.pop %v948
    %v950 = vmul.f32 %v927, 1.442695
    %v951 = vpow.pop %v950
    %v952 = vmul.f32 %v928, 1.442695
    %v953 = vpow.pop %v952
    %v954 = vmul.f32 %v929, 1.442695
    %v955 = vpow.pop %v954
    %v956 = vmul.f32 %v930, 1.442695
    %v957 = vpow.pop %v956
    %v958 = vmul.f32 %v931, 1.442695
    %v959 = vpow.pop %v958
    %v960 = vmul.f32 %v932, 1.442695
    %v961 = vpow.pop %v960
    %v962 = vmul.f32 %v933, 1.442695
    %v963 = vpow.pop %v962
    %v964 = vmul.f32 %v934, 1.442695
    %v965 = vpow.pop %v964
    %v966 = vmul.f32 %v935, 1.442695
    %v967 = vpow.pop %v966
    %v968 = vsel %vm871, %v937, 0.0
    %969 = vadd.xlane.f32.xlu0 %v968
    %v970 = vpop.xlane.xlu0 %969
    %v971 = vsel %vm871, %v939, 0.0
    %972 = vadd.xlane.f32.xlu0 %v971
    %v973 = vpop.xlane.xlu0 %972
    %v974 = vsel %vm871, %v941, 0.0
    %975 = vadd.xlane.f32.xlu0 %v974
    %v976 = vpop.xlane.xlu0 %975
    %v977 = vsel %vm871, %v943, 0.0
    %978 = vadd.xlane.f32.xlu0 %v977
    %v979 = vpop.xlane.xlu0 %978
    %v980 = vsel %vm871, %v945, 0.0
    %981 = vadd.xlane.f32.xlu0 %v980
    %v982 = vpop.xlane.xlu0 %981
    %v983 = vsel %vm871, %v947, 0.0
    %984 = vadd.xlane.f32.xlu0 %v983
    %v985 = vpop.xlane.xlu0 %984
    %v986 = vsel %vm871, %v949, 0.0
    %987 = vadd.xlane.f32.xlu0 %v986
    %v988 = vpop.xlane.xlu0 %987
    %v989 = vsel %vm871, %v951, 0.0
    %990 = vadd.xlane.f32.xlu0 %v989
    %v991 = vpop.xlane.xlu0 %990
    %v992 = vsel %vm871, %v953, 0.0
    %993 = vadd.xlane.f32.xlu0 %v992
    %v994 = vpop.xlane.xlu0 %993
    %v995 = vsel %vm871, %v955, 0.0
    %996 = vadd.xlane.f32.xlu0 %v995
    %v997 = vpop.xlane.xlu0 %996
    %v998 = vsel %vm871, %v957, 0.0
    %999 = vadd.xlane.f32.xlu0 %v998
    %v1000 = vpop.xlane.xlu0 %999
    %v1001 = vsel %vm871, %v959, 0.0
    %1002 = vadd.xlane.f32.xlu0 %v1001
    %v1003 = vpop.xlane.xlu0 %1002
    %v1004 = vsel %vm871, %v961, 0.0
    %1005 = vadd.xlane.f32.xlu0 %v1004
    %v1006 = vpop.xlane.xlu0 %1005
    %v1007 = vsel %vm871, %v963, 0.0
    %1008 = vadd.xlane.f32.xlu0 %v1007
    %v1009 = vpop.xlane.xlu0 %1008
    %v1010 = vsel %vm871, %v965, 0.0
    %1011 = vadd.xlane.f32.xlu0 %v1010
    %v1012 = vpop.xlane.xlu0 %1011
    %v1013 = vsel %vm871, %v967, 0.0
    %1014 = vadd.xlane.f32.xlu0 %v1013
    %v1015 = vpop.xlane.xlu0 %1014
    %v1016 = vrcp.pop %v970
    %v1017 = vmul.f32 %v937, %v1016
    %v1018 = vrcp.pop %v973
    %v1019 = vmul.f32 %v939, %v1018
    %v1020 = vrcp.pop %v976
    %v1021 = vmul.f32 %v941, %v1020
    %v1022 = vrcp.pop %v979
    %v1023 = vmul.f32 %v943, %v1022
    %v1024 = vrcp.pop %v982
    %v1025 = vmul.f32 %v945, %v1024
    %v1026 = vrcp.pop %v985
    %v1027 = vmul.f32 %v947, %v1026
    %v1028 = vrcp.pop %v988
    %v1029 = vmul.f32 %v949, %v1028
    %v1030 = vrcp.pop %v991
    %v1031 = vmul.f32 %v951, %v1030
    %v1032 = vrcp.pop %v994
    %v1033 = vmul.f32 %v953, %v1032
    %v1034 = vrcp.pop %v997
    %v1035 = vmul.f32 %v955, %v1034
    %v1036 = vrcp.pop %v1000
    %v1037 = vmul.f32 %v957, %v1036
    %v1038 = vrcp.pop %v1003
    %v1039 = vmul.f32 %v959, %v1038
    %v1040 = vrcp.pop %v1006
    %v1041 = vmul.f32 %v961, %v1040
    %v1042 = vrcp.pop %v1009
    %v1043 = vmul.f32 %v963, %v1042
    %v1044 = vrcp.pop %v1012
    %v1045 = vmul.f32 %v965, %v1044
    %v1046 = vrcp.pop %v1015
    %v1047 = vmul.f32 %v967, %v1046
    %1049 = vset.pattern.permute.xlu0 0
    %1050 = vperm.xlu0 %1049, %v1017
    %v1051 = vpop.permute.xlu0 %1050
    %1054 = vset.pattern.permute.xlu0 0
    %1055 = vperm.xlu0 %1054, %v1019
    %v1056 = vpop.permute.xlu0 %1055
    %1059 = vset.pattern.permute.xlu0 0
    %1060 = vperm.xlu0 %1059, %v1021
    %v1061 = vpop.permute.xlu0 %1060
    %1064 = vset.pattern.permute.xlu0 0
    %1065 = vperm.xlu0 %1064, %v1023
    %v1066 = vpop.permute.xlu0 %1065
    %1069 = vset.pattern.permute.xlu0 0
    %1070 = vperm.xlu0 %1069, %v1025
    %v1071 = vpop.permute.xlu0 %1070
    %1074 = vset.pattern.permute.xlu0 0
    %1075 = vperm.xlu0 %1074, %v1027
    %v1076 = vpop.permute.xlu0 %1075
    %1079 = vset.pattern.permute.xlu0 0
    %1080 = vperm.xlu0 %1079, %v1029
    %v1081 = vpop.permute.xlu0 %1080
    %1084 = vset.pattern.permute.xlu0 0
    %1085 = vperm.xlu0 %1084, %v1031
    %v1086 = vpop.permute.xlu0 %1085
    %1089 = vset.pattern.permute.xlu0 0
    %1090 = vperm.xlu0 %1089, %v1033
    %v1091 = vpop.permute.xlu0 %1090
    %1094 = vset.pattern.permute.xlu0 0
    %1095 = vperm.xlu0 %1094, %v1035
    %v1096 = vpop.permute.xlu0 %1095
    %1099 = vset.pattern.permute.xlu0 0
    %1100 = vperm.xlu0 %1099, %v1037
    %v1101 = vpop.permute.xlu0 %1100
    %1104 = vset.pattern.permute.xlu0 0
    %1105 = vperm.xlu0 %1104, %v1039
    %v1106 = vpop.permute.xlu0 %1105
    %1109 = vset.pattern.permute.xlu0 0
    %1110 = vperm.xlu0 %1109, %v1041
    %v1111 = vpop.permute.xlu0 %1110
    %1114 = vset.pattern.permute.xlu0 0
    %1115 = vperm.xlu0 %1114, %v1043
    %v1116 = vpop.permute.xlu0 %1115
    %1119 = vset.pattern.permute.xlu0 0
    %1120 = vperm.xlu0 %1119, %v1045
    %v1121 = vpop.permute.xlu0 %1120
    %1124 = vset.pattern.permute.xlu0 0
    %1125 = vperm.xlu0 %1124, %v1047
    %v1126 = vpop.permute.xlu0 %1125
    %v1128 = vmul.f32 %v1051, %v20
    %v1129 = vmul.f32 %v1056, %v21
    %v1130 = vmul.f32 %v1061, %v22
    %v1131 = vmul.f32 %v1066, %v23
    %v1132 = vmul.f32 %v1071, %v24
    %v1133 = vmul.f32 %v1076, %v25
    %v1134 = vmul.f32 %v1081, %v26
    %v1135 = vmul.f32 %v1086, %v27
    %v1136 = vmul.f32 %v1091, %v28
    %v1137 = vmul.f32 %v1096, %v29
    %v1138 = vmul.f32 %v1101, %v30
    %v1139 = vmul.f32 %v1106, %v31
    %v1140 = vmul.f32 %v1111, %v32
    %v1141 = vmul.f32 %v1116, %v33
    %v1142 = vmul.f32 %v1121, %v34
    %v1143 = vmul.f32 %v1126, %v35
    %1144 = vset.pattern.permute.xlu0 1
    %1145 = vperm.xlu0 %1144, %v1017
    %v1146 = vpop.permute.xlu0 %1145
    %1148 = vset.pattern.permute.xlu0 1
    %1149 = vperm.xlu0 %1148, %v1019
    %v1150 = vpop.permute.xlu0 %1149
    %1152 = vset.pattern.permute.xlu0 1
    %1153 = vperm.xlu0 %1152, %v1021
    %v1154 = vpop.permute.xlu0 %1153
    %1156 = vset.pattern.permute.xlu0 1
    %1157 = vperm.xlu0 %1156, %v1023
    %v1158 = vpop.permute.xlu0 %1157
    %1160 = vset.pattern.permute.xlu0 1
    %1161 = vperm.xlu0 %1160, %v1025
    %v1162 = vpop.permute.xlu0 %1161
    %1164 = vset.pattern.permute.xlu0 1
    %1165 = vperm.xlu0 %1164, %v1027
    %v1166 = vpop.permute.xlu0 %1165
    %1168 = vset.pattern.permute.xlu0 1
    %1169 = vperm.xlu0 %1168, %v1029
    %v1170 = vpop.permute.xlu0 %1169
    %1172 = vset.pattern.permute.xlu0 1
    %1173 = vperm.xlu0 %1172, %v1031
    %v1174 = vpop.permute.xlu0 %1173
    %1176 = vset.pattern.permute.xlu0 1
    %1177 = vperm.xlu0 %1176, %v1033
    %v1178 = vpop.permute.xlu0 %1177
    %1180 = vset.pattern.permute.xlu0 1
    %1181 = vperm.xlu0 %1180, %v1035
    %v1182 = vpop.permute.xlu0 %1181
    %1184 = vset.pattern.permute.xlu0 1
    %1185 = vperm.xlu0 %1184, %v1037
    %v1186 = vpop.permute.xlu0 %1185
    %1188 = vset.pattern.permute.xlu0 1
    %1189 = vperm.xlu0 %1188, %v1039
    %v1190 = vpop.permute.xlu0 %1189
    %1192 = vset.pattern.permute.xlu0 1
    %1193 = vperm.xlu0 %1192, %v1041
    %v1194 = vpop.permute.xlu0 %1193
    %1196 = vset.pattern.permute.xlu0 1
    %1197 = vperm.xlu0 %1196, %v1043
    %v1198 = vpop.permute.xlu0 %1197
    %1200 = vset.pattern.permute.xlu0 1
    %1201 = vperm.xlu0 %1200, %v1045
    %v1202 = vpop.permute.xlu0 %1201
    %1204 = vset.pattern.permute.xlu0 1
    %1205 = vperm.xlu0 %1204, %v1047
    %v1206 = vpop.permute.xlu0 %1205
    %v1208 = vmul.f32 %v1146, %v36
    %v1209 = vmul.f32 %v1150, %v37
    %v1210 = vmul.f32 %v1154, %v38
    %v1211 = vmul.f32 %v1158, %v39
    %v1212 = vmul.f32 %v1162, %v40
    %v1213 = vmul.f32 %v1166, %v41
    %v1214 = vmul.f32 %v1170, %v42
    %v1215 = vmul.f32 %v1174, %v43
    %v1216 = vmul.f32 %v1178, %v44
    %v1217 = vmul.f32 %v1182, %v45
    %v1218 = vmul.f32 %v1186, %v46
    %v1219 = vmul.f32 %v1190, %v47
    %v1220 = vmul.f32 %v1194, %v48
    %v1221 = vmul.f32 %v1198, %v49
    %v1222 = vmul.f32 %v1202, %v50
    %v1223 = vmul.f32 %v1206, %v51
    %v1224 = vadd.f32 %v1128, %v1208
    %v1225 = vadd.f32 %v1129, %v1209
    %v1226 = vadd.f32 %v1130, %v1210
    %v1227 = vadd.f32 %v1131, %v1211
    %v1228 = vadd.f32 %v1132, %v1212
    %v1229 = vadd.f32 %v1133, %v1213
    %v1230 = vadd.f32 %v1134, %v1214
    %v1231 = vadd.f32 %v1135, %v1215
    %v1232 = vadd.f32 %v1136, %v1216
    %v1233 = vadd.f32 %v1137, %v1217
    %v1234 = vadd.f32 %v1138, %v1218
    %v1235 = vadd.f32 %v1139, %v1219
    %v1236 = vadd.f32 %v1140, %v1220
    %v1237 = vadd.f32 %v1141, %v1221
    %v1238 = vadd.f32 %v1142, %v1222
    %v1239 = vadd.f32 %v1143, %v1223
    %1240 = vset.pattern.permute.xlu0 2
    %1241 = vperm.xlu0 %1240, %v1017
    %v1242 = vpop.permute.xlu0 %1241
    %1244 = vset.pattern.permute.xlu0 2
    %1245 = vperm.xlu0 %1244, %v1019
    %v1246 = vpop.permute.xlu0 %1245
    %1248 = vset.pattern.permute.xlu0 2
    %1249 = vperm.xlu0 %1248, %v1021
    %v1250 = vpop.permute.xlu0 %1249
    %1252 = vset.pattern.permute.xlu0 2
    %1253 = vperm.xlu0 %1252, %v1023
    %v1254 = vpop.permute.xlu0 %1253
    %1256 = vset.pattern.permute.xlu0 2
    %1257 = vperm.xlu0 %1256, %v1025
    %v1258 = vpop.permute.xlu0 %1257
    %1260 = vset.pattern.permute.xlu0 2
    %1261 = vperm.xlu0 %1260, %v1027
    %v1262 = vpop.permute.xlu0 %1261
    %1264 = vset.pattern.permute.xlu0 2
    %1265 = vperm.xlu0 %1264, %v1029
    %v1266 = vpop.permute.xlu0 %1265
    %1268 = vset.pattern.permute.xlu0 2
    %1269 = vperm.xlu0 %1268, %v1031
    %v1270 = vpop.permute.xlu0 %1269
    %1272 = vset.pattern.permute.xlu0 2
    %1273 = vperm.xlu0 %1272, %v1033
    %v1274 = vpop.permute.xlu0 %1273
    %1276 = vset.pattern.permute.xlu0 2
    %1277 = vperm.xlu0 %1276, %v1035
    %v1278 = vpop.permute.xlu0 %1277
    %1280 = vset.pattern.permute.xlu0 2
    %1281 = vperm.xlu0 %1280, %v1037
    %v1282 = vpop.permute.xlu0 %1281
    %1284 = vset.pattern.permute.xlu0 2
    %1285 = vperm.xlu0 %1284, %v1039
    %v1286 = vpop.permute.xlu0 %1285
    %1288 = vset.pattern.permute.xlu0 2
    %1289 = vperm.xlu0 %1288, %v1041
    %v1290 = vpop.permute.xlu0 %1289
    %1292 = vset.pattern.permute.xlu0 2
    %1293 = vperm.xlu0 %1292, %v1043
    %v1294 = vpop.permute.xlu0 %1293
    %1296 = vset.pattern.permute.xlu0 2
    %1297 = vperm.xlu0 %1296, %v1045
    %v1298 = vpop.permute.xlu0 %1297
    %1300 = vset.pattern.permute.xlu0 2
    %1301 = vperm.xlu0 %1300, %v1047
    %v1302 = vpop.permute.xlu0 %1301
    %v1304 = vmul.f32 %v1242, %v52
    %v1305 = vmul.f32 %v1246, %v53
    %v1306 = vmul.f32 %v1250, %v54
    %v1307 = vmul.f32 %v1254, %v55
    %v1308 = vmul.f32 %v1258, %v56
    %v1309 = vmul.f32 %v1262, %v57
    %v1310 = vmul.f32 %v1266, %v58
    %v1311 = vmul.f32 %v1270, %v59
    %v1312 = vmul.f32 %v1274, %v60
    %v1313 = vmul.f32 %v1278, %v61
    %v1314 = vmul.f32 %v1282, %v62
    %v1315 = vmul.f32 %v1286, %v63
    %v1316 = vmul.f32 %v1290, %v64
    %v1317 = vmul.f32 %v1294, %v65
    %v1318 = vmul.f32 %v1298, %v66
    %v1319 = vmul.f32 %v1302, %v67
    %v1320 = vadd.f32 %v1224, %v1304
    %v1321 = vadd.f32 %v1225, %v1305
    %v1322 = vadd.f32 %v1226, %v1306
    %v1323 = vadd.f32 %v1227, %v1307
    %v1324 = vadd.f32 %v1228, %v1308
    %v1325 = vadd.f32 %v1229, %v1309
    %v1326 = vadd.f32 %v1230, %v1310
    %v1327 = vadd.f32 %v1231, %v1311
    %v1328 = vadd.f32 %v1232, %v1312
    %v1329 = vadd.f32 %v1233, %v1313
    %v1330 = vadd.f32 %v1234, %v1314
    %v1331 = vadd.f32 %v1235, %v1315
    %v1332 = vadd.f32 %v1236, %v1316
    %v1333 = vadd.f32 %v1237, %v1317
    %v1334 = vadd.f32 %v1238, %v1318
    %v1335 = vadd.f32 %v1239, %v1319
    %1336 = vset.pattern.permute.xlu0 3
    %1337 = vperm.xlu0 %1336, %v1017
    %v1338 = vpop.permute.xlu0 %1337
    %1340 = vset.pattern.permute.xlu0 3
    %1341 = vperm.xlu0 %1340, %v1019
    %v1342 = vpop.permute.xlu0 %1341
    %1344 = vset.pattern.permute.xlu0 3
    %1345 = vperm.xlu0 %1344, %v1021
    %v1346 = vpop.permute.xlu0 %1345
    %1348 = vset.pattern.permute.xlu0 3
    %1349 = vperm.xlu0 %1348, %v1023
    %v1350 = vpop.permute.xlu0 %1349
    %1352 = vset.pattern.permute.xlu0 3
    %1353 = vperm.xlu0 %1352, %v1025
    %v1354 = vpop.permute.xlu0 %1353
    %1356 = vset.pattern.permute.xlu0 3
    %1357 = vperm.xlu0 %1356, %v1027
    %v1358 = vpop.permute.xlu0 %1357
    %1360 = vset.pattern.permute.xlu0 3
    %1361 = vperm.xlu0 %1360, %v1029
    %v1362 = vpop.permute.xlu0 %1361
    %1364 = vset.pattern.permute.xlu0 3
    %1365 = vperm.xlu0 %1364, %v1031
    %v1366 = vpop.permute.xlu0 %1365
    %1368 = vset.pattern.permute.xlu0 3
    %1369 = vperm.xlu0 %1368, %v1033
    %v1370 = vpop.permute.xlu0 %1369
    %1372 = vset.pattern.permute.xlu0 3
    %1373 = vperm.xlu0 %1372, %v1035
    %v1374 = vpop.permute.xlu0 %1373
    %1376 = vset.pattern.permute.xlu0 3
    %1377 = vperm.xlu0 %1376, %v1037
    %v1378 = vpop.permute.xlu0 %1377
    %1380 = vset.pattern.permute.xlu0 3
    %1381 = vperm.xlu0 %1380, %v1039
    %v1382 = vpop.permute.xlu0 %1381
    %1384 = vset.pattern.permute.xlu0 3
    %1385 = vperm.xlu0 %1384, %v1041
    %v1386 = vpop.permute.xlu0 %1385
    %1388 = vset.pattern.permute.xlu0 3
    %1389 = vperm.xlu0 %1388, %v1043
    %v1390 = vpop.permute.xlu0 %1389
    %1392 = vset.pattern.permute.xlu0 3
    %1393 = vperm.xlu0 %1392, %v1045
    %v1394 = vpop.permute.xlu0 %1393
    %1396 = vset.pattern.permute.xlu0 3
    %1397 = vperm.xlu0 %1396, %v1047
    %v1398 = vpop.permute.xlu0 %1397
    %v1400 = vmul.f32 %v1338, %v68
    %v1401 = vmul.f32 %v1342, %v69
    %v1402 = vmul.f32 %v1346, %v70
    %v1403 = vmul.f32 %v1350, %v71
    %v1404 = vmul.f32 %v1354, %v72
    %v1405 = vmul.f32 %v1358, %v73
    %v1406 = vmul.f32 %v1362, %v74
    %v1407 = vmul.f32 %v1366, %v75
    %v1408 = vmul.f32 %v1370, %v76
    %v1409 = vmul.f32 %v1374, %v77
    %v1410 = vmul.f32 %v1378, %v78
    %v1411 = vmul.f32 %v1382, %v79
    %v1412 = vmul.f32 %v1386, %v80
    %v1413 = vmul.f32 %v1390, %v81
    %v1414 = vmul.f32 %v1394, %v82
    %v1415 = vmul.f32 %v1398, %v83
    %v1416 = vadd.f32 %v1320, %v1400
    %v1417 = vadd.f32 %v1321, %v1401
    %v1418 = vadd.f32 %v1322, %v1402
    %v1419 = vadd.f32 %v1323, %v1403
    %v1420 = vadd.f32 %v1324, %v1404
    %v1421 = vadd.f32 %v1325, %v1405
    %v1422 = vadd.f32 %v1326, %v1406
    %v1423 = vadd.f32 %v1327, %v1407
    %v1424 = vadd.f32 %v1328, %v1408
    %v1425 = vadd.f32 %v1329, %v1409
    %v1426 = vadd.f32 %v1330, %v1410
    %v1427 = vadd.f32 %v1331, %v1411
    %v1428 = vadd.f32 %v1332, %v1412
    %v1429 = vadd.f32 %v1333, %v1413
    %v1430 = vadd.f32 %v1334, %v1414
    %v1431 = vadd.f32 %v1335, %v1415
    %1432 = vst [vmem:[#allocation2] sm:$0xff] %v1416
    %1433 = vst [vmem:[#allocation2 + $0x8] sm:$0xff] %v1417
    %1434 = vst [vmem:[#allocation2 + $0x10] sm:$0xff] %v1418
    %1435 = vst [vmem:[#allocation2 + $0x18] sm:$0xff] %v1419
    %1436 = vst [vmem:[#allocation2 + $0x20] sm:$0xff] %v1420
    %1437 = vst [vmem:[#allocation2 + $0x28] sm:$0xff] %v1421
    %1438 = vst [vmem:[#allocation2 + $0x30] sm:$0xff] %v1422
    %1439 = vst [vmem:[#allocation2 + $0x38] sm:$0xff] %v1423
    %1440 = vst [vmem:[#allocation2 + $0x40] sm:$0xff] %v1424
    %1441 = vst [vmem:[#allocation2 + $0x48] sm:$0xff] %v1425
    %1442 = vst [vmem:[#allocation2 + $0x50] sm:$0xff] %v1426
    %1443 = vst [vmem:[#allocation2 + $0x58] sm:$0xff] %v1427
    %1444 = vst [vmem:[#allocation2 + $0x60] sm:$0xff] %v1428
    %1445 = vst [vmem:[#allocation2 + $0x68] sm:$0xff] %v1429
    %1446 = vst [vmem:[#allocation2 + $0x70] sm:$0xff] %v1430
    %1447 = vst [vmem:[#allocation2 + $0x78] sm:$0xff] %v1431
    %1448 = vst.msk [vmem:[%s5] sm:$0xff] %vm871, %v1017
    %1449 = vst.msk [vmem:[%s5 + $0x8] sm:$0xff] %vm871, %v1019
    %1450 = vst.msk [vmem:[%s5 + $0x10] sm:$0xff] %vm871, %v1021
    %1451 = vst.msk [vmem:[%s5 + $0x18] sm:$0xff] %vm871, %v1023
    %1452 = vst.msk [vmem:[%s5 + $0x20] sm:$0xff] %vm871, %v1025
    %1453 = vst.msk [vmem:[%s5 + $0x28] sm:$0xff] %vm871, %v1027
    %1454 = vst.msk [vmem:[%s5 + $0x30] sm:$0xff] %vm871, %v1029
    %1455 = vst.msk [vmem:[%s5 + $0x38] sm:$0xff] %vm871, %v1031
    %1456 = vst.msk [vmem:[%s5 + $0x40] sm:$0xff] %vm871, %v1033
    %1457 = vst.msk [vmem:[%s5 + $0x48] sm:$0xff] %vm871, %v1035
    %1458 = vst.msk [vmem:[%s5 + $0x50] sm:$0xff] %vm871, %v1037
    %1459 = vst.msk [vmem:[%s5 + $0x58] sm:$0xff] %vm871, %v1039
    %1460 = vst.msk [vmem:[%s5 + $0x60] sm:$0xff] %vm871, %v1041
    %1461 = vst.msk [vmem:[%s5 + $0x68] sm:$0xff] %vm871, %v1043
    %1462 = vst.msk [vmem:[%s5 + $0x70] sm:$0xff] %vm871, %v1045
    %1463 = vst.msk [vmem:[%s5 + $0x78] sm:$0xff] %vm871, %v1047
    // Predicated region
    $region18: #{attention_forward.1} parent=1 // pred_check
      _
    $region19: #{attention_forward.1} parent=1 // pred_check_branch
      %1465 = sbr.rel (0) target = $region21
    $region20: #{attention_forward.1} parent=1 // pred_region
      %s1467 = ssub.s32 2048, 2048
      %1468 = vsyncadd [#allocation3], %s1467
      %s1469 = sshll.u32 [#allocation2], 4
      %s1470 = int_to_ptr.vmem [resolvable:$true] %s1469
      %1475 = dma.vmem_to_hbm [thread:$0]  %s1470, 2048, %s4, [#allocation3], 128, 128, 8
    $region21: #{attention_forward.1} parent=1 // pred_fallthru
      _
    // Predicated region
    $region22: #{attention_forward.1} parent=1 // pred_check
      _
    $region23: #{attention_forward.1} parent=1 // pred_check_branch
      %1477 = sbr.rel (0) target = $region25
    $region24: #{attention_forward.1} parent=1 // pred_region
      _
    $region25: #{attention_forward.1} parent=1 // pred_fallthru
      _
    // Predicated region
    $region26: #{attention_forward.1} parent=1 // pred_check
      _
    $region27: #{attention_forward.1} parent=1 // pred_check_branch
      %1479 = sbr.rel (0) target = $region29
    $region28: #{attention_forward.1} parent=1 // pred_region
      %1480 = dma.done [#allocation3], 2048
    $region29: #{attention_forward.1} parent=1 // pred_fallthru
      _
    // Predicated region
    $region30: #{attention_forward.1} parent=1 // pred_check
      _
    $region31: #{attention_forward.1} parent=1 // pred_check_branch
      %1482 = sbr.rel (0) target = $region33
    $region32: #{attention_forward.1} parent=1 // pred_region
      _
    $region33: #{attention_forward.1} parent=1 // pred_fallthru
      _
    %1483 = vsyncpa [#allocation3], 1

</llo_original>
